<compile_context>
chip_gen: v7x
topology: tpu7x:2x2x1
jax: 0.10.0
libtpu: 0.0.40
codegen_flags: <defaults>
</compile_context>

<pallas_src>
import math

import jax
import jax.numpy as jnp
from jax import lax
from jax.experimental import pallas as pl
from jax.experimental.pallas import tpu as pltpu


def _conv_geometry(image_shape, c_target=4, h_target=32, w_target=32):
    """Reproduces ConvModifier.__init__ kernel/padding arithmetic exactly."""
    c, h, w = image_shape
    if h >= h_target:
        kernel_height = h - h_target + 1
        padding_height = 0
    else:
        kernel_height = 1 if (h_target - h) % 2 == 0 else 2
        padding_height = (h_target - h + kernel_height - 1) // 2
    if w >= w_target:
        kernel_width = w - w_target + 1
        padding_width = 0
    else:
        kernel_width = 1 if (w_target - w) % 2 == 0 else 2
        padding_width = (w_target - w + kernel_width - 1) // 2
    return kernel_height, kernel_width, padding_height, padding_width


def _make_pointwise_kernel(C, C_out, H, W, H_out, W_out, ph, pw):
    """1x1-kernel conv: channel mix on the interior, bias on the padded border."""

    def kernel(x_ref, w_ref, b_ref, o_ref):
        # x_ref: (C, H, W) VMEM (unpadded input for this batch element)
        # w_ref: (C_out*C,) SMEM ; b_ref: (C_out,) SMEM
        # o_ref: (C_out, H_out, W_out) VMEM
        for o in range(C_out):
            b = b_ref[o]
            if ph or pw:
                # Padded border: conv taps see only zeros -> output is bias.
                o_ref[o] = jnp.full((H_out, W_out), b, dtype=o_ref.dtype)
            acc = jnp.full((H, W), b, dtype=jnp.float32)
            for c in range(C):
                acc = acc + w_ref[o * C + c] * x_ref[c]
            o_ref[o, ph:ph + H, pw:pw + W] = acc.astype(o_ref.dtype)

    return kernel


def _make_conv_kernel(C, C_out, kh, kw, H_out, W_out):
    """General conv: in-kernel im2col via statically shifted VMEM windows."""
    K = C * kh * kw

    def kernel(x_ref, w_ref, b_ref, o_ref):
        # x_ref: (C, H_pad, W_pad) VMEM ; w_ref: (C_out*K,) SMEM ; b_ref: (C_out,) SMEM
        # o_ref: (C_out, H_out, W_out) VMEM
        accs = [jnp.full((H_out, W_out), b_ref[o], dtype=jnp.float32)
                for o in range(C_out)]
        # TODO(synk): for very large derived kernels (huge kh*kw) this static
        # unroll should become a lax.fori_loop over taps with pl.ds windows to
        # bound code size / compile time.
        for c in range(C):
            for di in range(kh):
                for dj in range(kw):
                    win = x_ref[c, di:di + H_out, dj:dj + W_out]
                    base = (c * kh + di) * kw + dj
                    for o in range(C_out):
                        accs[o] = accs[o] + w_ref[o * K + base] * win
        for o in range(C_out):
            o_ref[o] = accs[o].astype(o_ref.dtype)

    return kernel


def conv_modifier_forward(x_nchw, weight, bias, image_shape,
                          c_target=4, h_target=32, w_target=32):
    """Forward pass of ConvModifier.

    x_nchw: (B, C, H, W) float32, weight: (C_out, C_in, KH, KW), bias: (C_out,)
    returns (B, C_out, 32, 32) matching nn.Conv2d semantics.
    """
    kh, kw, ph, pw = _conv_geometry(image_shape, c_target, h_target, w_target)
    B, C, H, W = x_nchw.shape
    H_out = H + 2 * ph - kh + 1
    W_out = W + 2 * pw - kw + 1
    C_out = weight.shape[0]
    K = C * kh * kw
    assert (H_out, W_out) == (h_target, w_target), (H_out, W_out)

    w_flat = weight.reshape(C_out * K).astype(jnp.float32)   # (o, c, di, dj) order
    b_vec = bias.reshape(C_out).astype(jnp.float32)

    cost = pl.CostEstimate(
        flops=2 * B * H_out * W_out * K * C_out,
        transcendentals=0,
        bytes_accessed=4 * (B * C * (H + 2 * ph) * (W + 2 * pw)
                            + C_out * K + C_out + B * C_out * H_out * W_out))

    smem = pl.BlockSpec(memory_space=pltpu.MemorySpace.SMEM)

    if kh == 1 and kw == 1:
        # Pointwise path: never materialize the padded input in HBM.
        kern = _make_pointwise_kernel(C, C_out, H, W, H_out, W_out, ph, pw)
        x_in = x_nchw
        H_in, W_in = H, W
    else:
        # General path: zero-pad spatially (only nonzero for the tiny kernel=2
        # small-image case; the h,w >= 32 geometries have no padding at all).
        if ph or pw:
            x_in = jnp.pad(x_nchw, ((0, 0), (0, 0), (ph, ph), (pw, pw)))
        else:
            x_in = x_nchw
        H_in, W_in = H + 2 * ph, W + 2 * pw
        kern = _make_conv_kernel(C, C_out, kh, kw, H_out, W_out)

    out = pl.pallas_call(
        kern,
        out_shape=jax.ShapeDtypeStruct((B, C_out, H_out, W_out), x_nchw.dtype),
        grid=(B,),
        in_specs=[
            pl.BlockSpec((None, C, H_in, W_in), lambda b: (b, 0, 0, 0)),
            smem,   # flattened weights (scalar reads)
            smem,   # bias (scalar reads)
        ],
        out_specs=pl.BlockSpec((None, C_out, H_out, W_out),
                               lambda b: (b, 0, 0, 0)),
        compiler_params=pltpu.CompilerParams(
            dimension_semantics=("parallel",)),
        cost_estimate=cost,
    )(x_in, w_flat, b_vec)
    return out


if __name__ == "__main__":
    def run_case(key, image_shape, B=2, c_target=4, h_target=32, w_target=32):
        C, H, W = image_shape
        kh, kw, ph, pw = _conv_geometry(image_shape, c_target, h_target, w_target)
        kx, kwk, kbk = jax.random.split(key, 3)
        x = jax.random.normal(kx, (B, C, H, W), dtype=jnp.float32)
        # Deterministic Conv2d-style init: uniform(-1/sqrt(fan_in), 1/sqrt(fan_in)).
        fan_in = C * kh * kw
        bound = 1.0 / math.sqrt(fan_in)
        weight = jax.random.uniform(kwk, (c_target, C, kh, kw),
                                    minval=-bound, maxval=bound, dtype=jnp.float32)
        bias = jax.random.uniform(kbk, (c_target,),
                                  minval=-bound, maxval=bound, dtype=jnp.float32)

        out = conv_modifier_forward(x, weight, bias, image_shape,
                                    c_target, h_target, w_target)
        out = jax.block_until_ready(out)
        assert out.shape == (B, c_target, h_target, w_target), out.shape

        ref = lax.conv_general_dilated(
            x, weight, window_strides=(1, 1),
            padding=((ph, ph), (pw, pw)),
            dimension_numbers=("NCHW", "OIHW", "NCHW"),
            precision=lax.Precision.HIGHEST,
        ) + bias.reshape(1, -1, 1, 1)
        ref = jax.block_until_ready(ref)
        err = float(jnp.max(jnp.abs(out - ref)))
        assert jnp.allclose(out, ref, atol=1e-4, rtol=1e-4), err

    key = jax.random.PRNGKey(0)
    k1, k2 = jax.random.split(key)
    # Case 1: (4,16,16) -> 1x1 kernel, pad 8 -> pointwise path, border filled in-kernel.
    run_case(k1, (4, 16, 16))
    # Case 2: (4,40,40) -> 9x9 kernel, pad 0 -> in-kernel shifted-window path (K=324).
    run_case(k2, (4, 40, 40))

    print("KERNEL_OK")
</pallas_src>

<mosaic_0001>
module attributes {stable_mosaic.version = 11 : i64} {
  func.func @kernel(%arg0: i32, %arg1: memref<1x4x16x16xf32, #tpu.memory_space<vmem>>, %arg2: memref<16xf32, #tpu.memory_space<smem>>, %arg3: memref<4xf32, #tpu.memory_space<smem>>, %arg4: memref<1x4x32x32xf32, #tpu.memory_space<vmem>>) attributes {dimension_semantics = [#tpu.dimension_semantics<parallel>], iteration_bounds = array<i64: 2>, scalar_prefetch = 0 : i64, scratch_operands = 0 : i64, tpu.core_type = #tpu.core_type<tc>, window_params = [{transform_indices = @transform_0, window_bounds = array<i64: 1, 4, 16, 16>}, {transform_indices = @transform_1, window_bounds = array<i64: 16>}, {transform_indices = @transform_2, window_bounds = array<i64: 4>}, {transform_indices = @transform_3, window_bounds = array<i64: 1, 4, 32, 32>}]} {
    %c0 = arith.constant 0 : index
    %0 = memref.load %arg3[%c0] : memref<4xf32, #tpu.memory_space<smem>>
    %1 = vector.broadcast %0 : f32 to vector<32x32xf32>
    %c0_0 = arith.constant 0 : index
    %c0_1 = arith.constant 0 : index
    %c0_2 = arith.constant 0 : index
    %c0_3 = arith.constant 0 : index
    %2 = vector.load %arg4[%c0_0, %c0_1, %c0_2, %c0_3] : memref<1x4x32x32xf32, #tpu.memory_space<vmem>>, vector<1x1x32x32xf32>
    %3 = vector.shape_cast %2 : vector<1x1x32x32xf32> to vector<32x32xf32>
    %4 = vector.shape_cast %1 : vector<32x32xf32> to vector<1x1x32x32xf32>
    tpu.vector_store %arg4[%c0_0, %c0_1, %c0_2, %c0_3], %4 {strides = array<i32>} : memref<1x4x32x32xf32, #tpu.memory_space<vmem>>, vector<1x1x32x32xf32>,
    %5 = vector.broadcast %0 : f32 to vector<16x16xf32>
    %c0_4 = arith.constant 0 : index
    %6 = memref.load %arg2[%c0_4] : memref<16xf32, #tpu.memory_space<smem>>
    %c0_5 = arith.constant 0 : index
    %c0_6 = arith.constant 0 : index
    %c0_7 = arith.constant 0 : index
    %c0_8 = arith.constant 0 : index
    %7 = vector.load %arg1[%c0_5, %c0_6, %c0_7, %c0_8] : memref<1x4x16x16xf32, #tpu.memory_space<vmem>>, vector<1x1x16x16xf32>
    %8 = vector.shape_cast %7 : vector<1x1x16x16xf32> to vector<16x16xf32>
    %9 = vector.broadcast %6 : f32 to vector<16x16xf32>
    %10 = arith.mulf %9, %8 : vector<16x16xf32>
    %11 = arith.addf %5, %10 : vector<16x16xf32>
    %c1 = arith.constant 1 : index
    %12 = memref.load %arg2[%c1] : memref<16xf32, #tpu.memory_space<smem>>
    %c0_9 = arith.constant 0 : index
    %c1_10 = arith.constant 1 : index
    %c0_11 = arith.constant 0 : index
    %c0_12 = arith.constant 0 : index
    %13 = vector.load %arg1[%c0_9, %c1_10, %c0_11, %c0_12] : memref<1x4x16x16xf32, #tpu.memory_space<vmem>>, vector<1x1x16x16xf32>
    %14 = vector.shape_cast %13 : vector<1x1x16x16xf32> to vector<16x16xf32>
    %15 = vector.broadcast %12 : f32 to vector<16x16xf32>
    %16 = arith.mulf %15, %14 : vector<16x16xf32>
    %17 = arith.addf %11, %16 : vector<16x16xf32>
    %c2 = arith.constant 2 : index
    %18 = memref.load %arg2[%c2] : memref<16xf32, #tpu.memory_space<smem>>
    %c0_13 = arith.constant 0 : index
    %c2_14 = arith.constant 2 : index
    %c0_15 = arith.constant 0 : index
    %c0_16 = arith.constant 0 : index
    %19 = vector.load %arg1[%c0_13, %c2_14, %c0_15, %c0_16] : memref<1x4x16x16xf32, #tpu.memory_space<vmem>>, vector<1x1x16x16xf32>
    %20 = vector.shape_cast %19 : vector<1x1x16x16xf32> to vector<16x16xf32>
    %21 = vector.broadcast %18 : f32 to vector<16x16xf32>
    %22 = arith.mulf %21, %20 : vector<16x16xf32>
    %23 = arith.addf %17, %22 : vector<16x16xf32>
    %c3 = arith.constant 3 : index
    %24 = memref.load %arg2[%c3] : memref<16xf32, #tpu.memory_space<smem>>
    %c0_17 = arith.constant 0 : index
    %c3_18 = arith.constant 3 : index
    %c0_19 = arith.constant 0 : index
    %c0_20 = arith.constant 0 : index
    %25 = vector.load %arg1[%c0_17, %c3_18, %c0_19, %c0_20] : memref<1x4x16x16xf32, #tpu.memory_space<vmem>>, vector<1x1x16x16xf32>
    %26 = vector.shape_cast %25 : vector<1x1x16x16xf32> to vector<16x16xf32>
    %27 = vector.broadcast %24 : f32 to vector<16x16xf32>
    %28 = arith.mulf %27, %26 : vector<16x16xf32>
    %29 = arith.addf %23, %28 : vector<16x16xf32>
    %c0_21 = arith.constant 0 : index
    %c0_22 = arith.constant 0 : index
    %c8 = arith.constant 8 : index
    %c8_23 = arith.constant 8 : index
    %30 = vector.load %arg4[%c0_21, %c0_22, %c8, %c8_23] : memref<1x4x32x32xf32, #tpu.memory_space<vmem>>, vector<1x1x16x16xf32>
    %31 = vector.shape_cast %30 : vector<1x1x16x16xf32> to vector<16x16xf32>
    %32 = vector.shape_cast %29 : vector<16x16xf32> to vector<1x1x16x16xf32>
    tpu.vector_store %arg4[%c0_21, %c0_22, %c8, %c8_23], %32 {strides = array<i32>} : memref<1x4x32x32xf32, #tpu.memory_space<vmem>>, vector<1x1x16x16xf32>,
    %c1_24 = arith.constant 1 : index
    %33 = memref.load %arg3[%c1_24] : memref<4xf32, #tpu.memory_space<smem>>
    %34 = vector.broadcast %33 : f32 to vector<32x32xf32>
    %c0_25 = arith.constant 0 : index
    %c1_26 = arith.constant 1 : index
    %c0_27 = arith.constant 0 : index
    %c0_28 = arith.constant 0 : index
    %35 = vector.load %arg4[%c0_25, %c1_26, %c0_27, %c0_28] : memref<1x4x32x32xf32, #tpu.memory_space<vmem>>, vector<1x1x32x32xf32>
    %36 = vector.shape_cast %35 : vector<1x1x32x32xf32> to vector<32x32xf32>
    %37 = vector.shape_cast %34 : vector<32x32xf32> to vector<1x1x32x32xf32>
    tpu.vector_store %arg4[%c0_25, %c1_26, %c0_27, %c0_28], %37 {strides = array<i32>} : memref<1x4x32x32xf32, #tpu.memory_space<vmem>>, vector<1x1x32x32xf32>,
    %38 = vector.broadcast %33 : f32 to vector<16x16xf32>
    %c4 = arith.constant 4 : index
    %39 = memref.load %arg2[%c4] : memref<16xf32, #tpu.memory_space<smem>>
    %c0_29 = arith.constant 0 : index
    %c0_30 = arith.constant 0 : index
    %c0_31 = arith.constant 0 : index
    %c0_32 = arith.constant 0 : index
    %40 = vector.load %arg1[%c0_29, %c0_30, %c0_31, %c0_32] : memref<1x4x16x16xf32, #tpu.memory_space<vmem>>, vector<1x1x16x16xf32>
    %41 = vector.shape_cast %40 : vector<1x1x16x16xf32> to vector<16x16xf32>
    %42 = vector.broadcast %39 : f32 to vector<16x16xf32>
    %43 = arith.mulf %42, %41 : vector<16x16xf32>
    %44 = arith.addf %38, %43 : vector<16x16xf32>
    %c5 = arith.constant 5 : index
    %45 = memref.load %arg2[%c5] : memref<16xf32, #tpu.memory_space<smem>>
    %c0_33 = arith.constant 0 : index
    %c1_34 = arith.constant 1 : index
    %c0_35 = arith.constant 0 : index
    %c0_36 = arith.constant 0 : index
    %46 = vector.load %arg1[%c0_33, %c1_34, %c0_35, %c0_36] : memref<1x4x16x16xf32, #tpu.memory_space<vmem>>, vector<1x1x16x16xf32>
    %47 = vector.shape_cast %46 : vector<1x1x16x16xf32> to vector<16x16xf32>
    %48 = vector.broadcast %45 : f32 to vector<16x16xf32>
    %49 = arith.mulf %48, %47 : vector<16x16xf32>
    %50 = arith.addf %44, %49 : vector<16x16xf32>
    %c6 = arith.constant 6 : index
    %51 = memref.load %arg2[%c6] : memref<16xf32, #tpu.memory_space<smem>>
    %c0_37 = arith.constant 0 : index
    %c2_38 = arith.constant 2 : index
    %c0_39 = arith.constant 0 : index
    %c0_40 = arith.constant 0 : index
    %52 = vector.load %arg1[%c0_37, %c2_38, %c0_39, %c0_40] : memref<1x4x16x16xf32, #tpu.memory_space<vmem>>, vector<1x1x16x16xf32>
    %53 = vector.shape_cast %52 : vector<1x1x16x16xf32> to vector<16x16xf32>
    %54 = vector.broadcast %51 : f32 to vector<16x16xf32>
    %55 = arith.mulf %54, %53 : vector<16x16xf32>
    %56 = arith.addf %50, %55 : vector<16x16xf32>
    %c7 = arith.constant 7 : index
    %57 = memref.load %arg2[%c7] : memref<16xf32, #tpu.memory_space<smem>>
    %c0_41 = arith.constant 0 : index
    %c3_42 = arith.constant 3 : index
    %c0_43 = arith.constant 0 : index
    %c0_44 = arith.constant 0 : index
    %58 = vector.load %arg1[%c0_41, %c3_42, %c0_43, %c0_44] : memref<1x4x16x16xf32, #tpu.memory_space<vmem>>, vector<1x1x16x16xf32>
    %59 = vector.shape_cast %58 : vector<1x1x16x16xf32> to vector<16x16xf32>
    %60 = vector.broadcast %57 : f32 to vector<16x16xf32>
    %61 = arith.mulf %60, %59 : vector<16x16xf32>
    %62 = arith.addf %56, %61 : vector<16x16xf32>
    %c0_45 = arith.constant 0 : index
    %c1_46 = arith.constant 1 : index
    %c8_47 = arith.constant 8 : index
    %c8_48 = arith.constant 8 : index
    %63 = vector.load %arg4[%c0_45, %c1_46, %c8_47, %c8_48] : memref<1x4x32x32xf32, #tpu.memory_space<vmem>>, vector<1x1x16x16xf32>
    %64 = vector.shape_cast %63 : vector<1x1x16x16xf32> to vector<16x16xf32>
    %65 = vector.shape_cast %62 : vector<16x16xf32> to vector<1x1x16x16xf32>
    tpu.vector_store %arg4[%c0_45, %c1_46, %c8_47, %c8_48], %65 {strides = array<i32>} : memref<1x4x32x32xf32, #tpu.memory_space<vmem>>, vector<1x1x16x16xf32>,
    %c2_49 = arith.constant 2 : index
    %66 = memref.load %arg3[%c2_49] : memref<4xf32, #tpu.memory_space<smem>>
    %67 = vector.broadcast %66 : f32 to vector<32x32xf32>
    %c0_50 = arith.constant 0 : index
    %c2_51 = arith.constant 2 : index
    %c0_52 = arith.constant 0 : index
    %c0_53 = arith.constant 0 : index
    %68 = vector.load %arg4[%c0_50, %c2_51, %c0_52, %c0_53] : memref<1x4x32x32xf32, #tpu.memory_space<vmem>>, vector<1x1x32x32xf32>
    %69 = vector.shape_cast %68 : vector<1x1x32x32xf32> to vector<32x32xf32>
    %70 = vector.shape_cast %67 : vector<32x32xf32> to vector<1x1x32x32xf32>
    tpu.vector_store %arg4[%c0_50, %c2_51, %c0_52, %c0_53], %70 {strides = array<i32>} : memref<1x4x32x32xf32, #tpu.memory_space<vmem>>, vector<1x1x32x32xf32>,
    %71 = vector.broadcast %66 : f32 to vector<16x16xf32>
    %c8_54 = arith.constant 8 : index
    %72 = memref.load %arg2[%c8_54] : memref<16xf32, #tpu.memory_space<smem>>
    %c0_55 = arith.constant 0 : index
    %c0_56 = arith.constant 0 : index
    %c0_57 = arith.constant 0 : index
    %c0_58 = arith.constant 0 : index
    %73 = vector.load %arg1[%c0_55, %c0_56, %c0_57, %c0_58] : memref<1x4x16x16xf32, #tpu.memory_space<vmem>>, vector<1x1x16x16xf32>
    %74 = vector.shape_cast %73 : vector<1x1x16x16xf32> to vector<16x16xf32>
    %75 = vector.broadcast %72 : f32 to vector<16x16xf32>
    %76 = arith.mulf %75, %74 : vector<16x16xf32>
    %77 = arith.addf %71, %76 : vector<16x16xf32>
    %c9 = arith.constant 9 : index
    %78 = memref.load %arg2[%c9] : memref<16xf32, #tpu.memory_space<smem>>
    %c0_59 = arith.constant 0 : index
    %c1_60 = arith.constant 1 : index
    %c0_61 = arith.constant 0 : index
    %c0_62 = arith.constant 0 : index
    %79 = vector.load %arg1[%c0_59, %c1_60, %c0_61, %c0_62] : memref<1x4x16x16xf32, #tpu.memory_space<vmem>>, vector<1x1x16x16xf32>
    %80 = vector.shape_cast %79 : vector<1x1x16x16xf32> to vector<16x16xf32>
    %81 = vector.broadcast %78 : f32 to vector<16x16xf32>
    %82 = arith.mulf %81, %80 : vector<16x16xf32>
    %83 = arith.addf %77, %82 : vector<16x16xf32>
    %c10 = arith.constant 10 : index
    %84 = memref.load %arg2[%c10] : memref<16xf32, #tpu.memory_space<smem>>
    %c0_63 = arith.constant 0 : index
    %c2_64 = arith.constant 2 : index
    %c0_65 = arith.constant 0 : index
    %c0_66 = arith.constant 0 : index
    %85 = vector.load %arg1[%c0_63, %c2_64, %c0_65, %c0_66] : memref<1x4x16x16xf32, #tpu.memory_space<vmem>>, vector<1x1x16x16xf32>
    %86 = vector.shape_cast %85 : vector<1x1x16x16xf32> to vector<16x16xf32>
    %87 = vector.broadcast %84 : f32 to vector<16x16xf32>
    %88 = arith.mulf %87, %86 : vector<16x16xf32>
    %89 = arith.addf %83, %88 : vector<16x16xf32>
    %c11 = arith.constant 11 : index
    %90 = memref.load %arg2[%c11] : memref<16xf32, #tpu.memory_space<smem>>
    %c0_67 = arith.constant 0 : index
    %c3_68 = arith.constant 3 : index
    %c0_69 = arith.constant 0 : index
    %c0_70 = arith.constant 0 : index
    %91 = vector.load %arg1[%c0_67, %c3_68, %c0_69, %c0_70] : memref<1x4x16x16xf32, #tpu.memory_space<vmem>>, vector<1x1x16x16xf32>
    %92 = vector.shape_cast %91 : vector<1x1x16x16xf32> to vector<16x16xf32>
    %93 = vector.broadcast %90 : f32 to vector<16x16xf32>
    %94 = arith.mulf %93, %92 : vector<16x16xf32>
    %95 = arith.addf %89, %94 : vector<16x16xf32>
    %c0_71 = arith.constant 0 : index
    %c2_72 = arith.constant 2 : index
    %c8_73 = arith.constant 8 : index
    %c8_74 = arith.constant 8 : index
    %96 = vector.load %arg4[%c0_71, %c2_72, %c8_73, %c8_74] : memref<1x4x32x32xf32, #tpu.memory_space<vmem>>, vector<1x1x16x16xf32>
    %97 = vector.shape_cast %96 : vector<1x1x16x16xf32> to vector<16x16xf32>
    %98 = vector.shape_cast %95 : vector<16x16xf32> to vector<1x1x16x16xf32>
    tpu.vector_store %arg4[%c0_71, %c2_72, %c8_73, %c8_74], %98 {strides = array<i32>} : memref<1x4x32x32xf32, #tpu.memory_space<vmem>>, vector<1x1x16x16xf32>,
    %c3_75 = arith.constant 3 : index
    %99 = memref.load %arg3[%c3_75] : memref<4xf32, #tpu.memory_space<smem>>
    %100 = vector.broadcast %99 : f32 to vector<32x32xf32>
    %c0_76 = arith.constant 0 : index
    %c3_77 = arith.constant 3 : index
    %c0_78 = arith.constant 0 : index
    %c0_79 = arith.constant 0 : index
    %101 = vector.load %arg4[%c0_76, %c3_77, %c0_78, %c0_79] : memref<1x4x32x32xf32, #tpu.memory_space<vmem>>, vector<1x1x32x32xf32>
    %102 = vector.shape_cast %101 : vector<1x1x32x32xf32> to vector<32x32xf32>
    %103 = vector.shape_cast %100 : vector<32x32xf32> to vector<1x1x32x32xf32>
    tpu.vector_store %arg4[%c0_76, %c3_77, %c0_78, %c0_79], %103 {strides = array<i32>} : memref<1x4x32x32xf32, #tpu.memory_space<vmem>>, vector<1x1x32x32xf32>,
    %104 = vector.broadcast %99 : f32 to vector<16x16xf32>
    %c12 = arith.constant 12 : index
    %105 = memref.load %arg2[%c12] : memref<16xf32, #tpu.memory_space<smem>>
    %c0_80 = arith.constant 0 : index
    %c0_81 = arith.constant 0 : index
    %c0_82 = arith.constant 0 : index
    %c0_83 = arith.constant 0 : index
    %106 = vector.load %arg1[%c0_80, %c0_81, %c0_82, %c0_83] : memref<1x4x16x16xf32, #tpu.memory_space<vmem>>, vector<1x1x16x16xf32>
    %107 = vector.shape_cast %106 : vector<1x1x16x16xf32> to vector<16x16xf32>
    %108 = vector.broadcast %105 : f32 to vector<16x16xf32>
    %109 = arith.mulf %108, %107 : vector<16x16xf32>
    %110 = arith.addf %104, %109 : vector<16x16xf32>
    %c13 = arith.constant 13 : index
    %111 = memref.load %arg2[%c13] : memref<16xf32, #tpu.memory_space<smem>>
    %c0_84 = arith.constant 0 : index
    %c1_85 = arith.constant 1 : index
    %c0_86 = arith.constant 0 : index
    %c0_87 = arith.constant 0 : index
    %112 = vector.load %arg1[%c0_84, %c1_85, %c0_86, %c0_87] : memref<1x4x16x16xf32, #tpu.memory_space<vmem>>, vector<1x1x16x16xf32>
    %113 = vector.shape_cast %112 : vector<1x1x16x16xf32> to vector<16x16xf32>
    %114 = vector.broadcast %111 : f32 to vector<16x16xf32>
    %115 = arith.mulf %114, %113 : vector<16x16xf32>
    %116 = arith.addf %110, %115 : vector<16x16xf32>
    %c14 = arith.constant 14 : index
    %117 = memref.load %arg2[%c14] : memref<16xf32, #tpu.memory_space<smem>>
    %c0_88 = arith.constant 0 : index
    %c2_89 = arith.constant 2 : index
    %c0_90 = arith.constant 0 : index
    %c0_91 = arith.constant 0 : index
    %118 = vector.load %arg1[%c0_88, %c2_89, %c0_90, %c0_91] : memref<1x4x16x16xf32, #tpu.memory_space<vmem>>, vector<1x1x16x16xf32>
    %119 = vector.shape_cast %118 : vector<1x1x16x16xf32> to vector<16x16xf32>
    %120 = vector.broadcast %117 : f32 to vector<16x16xf32>
    %121 = arith.mulf %120, %119 : vector<16x16xf32>
    %122 = arith.addf %116, %121 : vector<16x16xf32>
    %c15 = arith.constant 15 : index
    %123 = memref.load %arg2[%c15] : memref<16xf32, #tpu.memory_space<smem>>
    %c0_92 = arith.constant 0 : index
    %c3_93 = arith.constant 3 : index
    %c0_94 = arith.constant 0 : index
    %c0_95 = arith.constant 0 : index
    %124 = vector.load %arg1[%c0_92, %c3_93, %c0_94, %c0_95] : memref<1x4x16x16xf32, #tpu.memory_space<vmem>>, vector<1x1x16x16xf32>
    %125 = vector.shape_cast %124 : vector<1x1x16x16xf32> to vector<16x16xf32>
    %126 = vector.broadcast %123 : f32 to vector<16x16xf32>
    %127 = arith.mulf %126, %125 : vector<16x16xf32>
    %128 = arith.addf %122, %127 : vector<16x16xf32>
    %c0_96 = arith.constant 0 : index
    %c3_97 = arith.constant 3 : index
    %c8_98 = arith.constant 8 : index
    %c8_99 = arith.constant 8 : index
    %129 = vector.load %arg4[%c0_96, %c3_97, %c8_98, %c8_99] : memref<1x4x32x32xf32, #tpu.memory_space<vmem>>, vector<1x1x16x16xf32>
    %130 = vector.shape_cast %129 : vector<1x1x16x16xf32> to vector<16x16xf32>
    %131 = vector.shape_cast %128 : vector<16x16xf32> to vector<1x1x16x16xf32>
    tpu.vector_store %arg4[%c0_96, %c3_97, %c8_98, %c8_99], %131 {strides = array<i32>} : memref<1x4x32x32xf32, #tpu.memory_space<vmem>>, vector<1x1x16x16xf32>,
    return
  }
  func.func @transform_0(%arg0: i32) -> (i32, i32, i32, i32) {
    %c0_i32 = arith.constant 0 : i32
    %c0_i32_0 = arith.constant 0 : i32
    %c0_i32_1 = arith.constant 0 : i32
    %c0_i32_2 = arith.constant 0 : i32
    return %arg0, %c0_i32, %c0_i32_0, %c0_i32_1 : i32, i32, i32, i32
  }
  func.func @transform_1(%arg0: i32) -> i32 {
    %c0_i32 = arith.constant 0 : i32
    %c0_i32_0 = arith.constant 0 : i32
    return %c0_i32 : i32
  }
  func.func @transform_2(%arg0: i32) -> i32 {
    %c0_i32 = arith.constant 0 : i32
    %c0_i32_0 = arith.constant 0 : i32
    return %c0_i32 : i32
  }
  func.func @transform_3(%arg0: i32) -> (i32, i32, i32, i32) {
    %c0_i32 = arith.constant 0 : i32
    %c0_i32_0 = arith.constant 0 : i32
    %c0_i32_1 = arith.constant 0 : i32
    %c0_i32_2 = arith.constant 0 : i32
    return %arg0, %c0_i32, %c0_i32_0, %c0_i32_1 : i32, i32, i32, i32
  }
}

</mosaic_0001>

<llo_original>
// kernel: tpu_custom_call.1
$region0: #{tpu_custom_call.1}
  #allocation0 [shape = 'u32[]', space=smem, size = 0x4, offset = 0x4, fixed_abs, tag = 'smem constant byte address 0x4 - core index']
  #allocation1 [shape = 'u32[144,128]{1,0:T(1,128)}', space=vmem, size = 0x12000, scoped, tag = 'internal scratch']
  %s0 = inlined_call_operand.hbm [shape: f32[2,4,16,16], index: 0, kind: input, shape index: {}]
  %s1 = inlined_call_operand.vmem [shape: f32[16], index: 1, kind: input, shape index: {}]
  %s2 = inlined_call_operand.vmem [shape: f32[4], index: 2, kind: input, shape index: {}]
  %s3 = inlined_call_operand.hbm [shape: f32[2,4,32,32], index: 3, kind: output, shape index: {}]
  %s4 = sld [smem:[#allocation0]]
  $region57: #{tpu_custom_call.1} parent=0
    _
  %s6 = ssub.s32 1, %s4
  %s7 = scalar_select 0, %s6, %s4
  $region1: #{tpu_custom_call.1} parent=0
    #allocation2 [shape = 'u8[65536]{0}', space=vmem, size = 0x10000, scoped, tag = 'input window, operand 0']
    #allocation3 [shape = 's32[2]{0}', space=sflag, size = 0x8, scoped, tag = 'scoped memory for tpu_custom_call.1']
    #allocation4 [shape = 's32[2]{0}', space=sflag, size = 0x8, scoped, tag = 'scoped memory for tpu_custom_call.1']
    #allocation5 [shape = 's32[2]{0}', space=sflag, size = 0x8, scoped, tag = 'scoped memory for tpu_custom_call.1']
    #allocation6 [shape = 'u8[512]{0}', space=smem, size = 0x200, scoped, tag = 'input window, operand 1, single buffered']
    #allocation7 [shape = 'u8[512]{0}', space=smem, size = 0x200, scoped, tag = 'input window, operand 2, single buffered']
    #allocation8 [shape = 's32[1]{0}', space=sflag, size = 0x4, scoped, tag = 'scoped memory for tpu_custom_call.1']
    #allocation9 [shape = 'u8[131072]{0}', space=vmem, size = 0x20000, scoped, tag = 'output window, operand 0']
    %8 = vsyncpa [#allocation3], 0
    %s9 = scalar_lea.sflag [#allocation3], 1
    %10 = vsyncpa %s9, 0
    %11 = vsyncpa [#allocation5], 0
    %12 = vsyncpa [#allocation8], 0
    %13 = vsyncpa [#allocation4], 0
    %s14 = scalar_lea.sflag [#allocation4], 1
    %15 = vsyncpa %s14, 0
    loop: start=0, step=1, limit=4
    $region2: #{tpu_custom_call.1} parent=1 // loop_pre_header
      _
    $region3: #{tpu_custom_call.1} parent=1 // loop_header
      %s17 = sphi 0, %s21
      %p18 = scmp.ge.s32.totalorder %s17, 4
      %s27 = sphi 0, %s29
      %s30 = sphi 0, %s27
      %s31 = sphi 0, %s30
      %s47 = sphi 0, %s31
      %s51 = sphi 0, %s51
      %s53 = sphi 0, %s51
      %s54 = sphi 0, %s53
      %s68 = sphi 0, %s54
      %s72 = sphi 0, %s72
      %s74 = sphi 0, %s72
      %s75 = sphi 0, %s74
      %s89 = sphi 0, %s75
      %s95 = sphi 0, %s97
      %s98 = sphi 0, %s95
      %s99 = sphi 0, %s98
      %s115 = sphi 0, %s99
    $region4: #{tpu_custom_call.1} parent=1 // loop_header_branch
      %20 = sbr.rel (%p18) target = $region8
    $region5: #{tpu_custom_call.1} parent=1 // loop_body
      %s22 = ssub.s32 %s17, 1
      %s23 = ssub.s32 %s17, 2
      %s24 = sadd.s32 %s17, 1
      %s25 = ssub.s32 %s17, %s24
      %p26 = scmp.eq.s32.totalorder %s25, 0
      %s28 = sadd.s32 %s27, 1
      %s29 = scalar_select %p26, %s27, %s28
      %p32 = pneg %p26
      %p33 = scmp.eq.s32.totalorder %s17, 1
      %p34 = por %p32, %p33
      %p35 = scmp.ne.s32.totalorder %s27, %s30
      %p36 = scmp.eq.s32.totalorder %s17, 0
      %p37 = por %p35, %p36
      %p38 = scmp.ne.s32.totalorder %s27, %s30
      %p39 = scmp.eq.s32.totalorder %s22, 1
      %p40 = por %p38, %p39
      %p41 = scmp.ne.s32.totalorder %s30, %s31
      %p42 = scmp.eq.s32.totalorder %s22, 0
      %p43 = por %p41, %p42
      %p44 = scmp.ne.s32.totalorder %s30, %s31
      %p45 = scmp.eq.s32.totalorder %s23, 1
      %p46 = por %p44, %p45
      %p48 = scmp.ne.s32.totalorder %s31, %s47
      %p49 = scmp.eq.s32.totalorder %s23, 0
      %p50 = por %p48, %p49
      %s52 = sadd.s32 %s51, 1
      %p55 = scmp.eq.s32.totalorder %s17, 1
      %p56 = scmp.ne.s32.totalorder %s51, %s53
      %p57 = scmp.eq.s32.totalorder %s17, 0
      %p58 = por %p56, %p57
      %p59 = scmp.ne.s32.totalorder %s51, %s53
      %p60 = scmp.eq.s32.totalorder %s22, 1
      %p61 = por %p59, %p60
      %p62 = scmp.ne.s32.totalorder %s53, %s54
      %p63 = scmp.eq.s32.totalorder %s22, 0
      %p64 = por %p62, %p63
      %p65 = scmp.ne.s32.totalorder %s53, %s54
      %p66 = scmp.eq.s32.totalorder %s23, 1
      %p67 = por %p65, %p66
      %p69 = scmp.ne.s32.totalorder %s54, %s68
      %p70 = scmp.eq.s32.totalorder %s23, 0
      %p71 = por %p69, %p70
      %s73 = sadd.s32 %s72, 1
      %p76 = scmp.eq.s32.totalorder %s17, 1
      %p77 = scmp.ne.s32.totalorder %s72, %s74
      %p78 = scmp.eq.s32.totalorder %s17, 0
      %p79 = por %p77, %p78
      %p80 = scmp.ne.s32.totalorder %s72, %s74
      %p81 = scmp.eq.s32.totalorder %s22, 1
      %p82 = por %p80, %p81
      %p83 = scmp.ne.s32.totalorder %s74, %s75
      %p84 = scmp.eq.s32.totalorder %s22, 0
      %p85 = por %p83, %p84
      %p86 = scmp.ne.s32.totalorder %s74, %s75
      %p87 = scmp.eq.s32.totalorder %s23, 1
      %p88 = por %p86, %p87
      %p90 = scmp.ne.s32.totalorder %s75, %s89
      %p91 = scmp.eq.s32.totalorder %s23, 0
      %p92 = por %p90, %p91
      %s93 = ssub.s32 %s17, %s24
      %p94 = scmp.eq.s32.totalorder %s93, 0
      %s96 = sadd.s32 %s95, 1
      %s97 = scalar_select %p94, %s95, %s96
      %p100 = pneg %p94
      %p101 = scmp.eq.s32.totalorder %s17, 1
      %p102 = por %p100, %p101
      %p103 = scmp.ne.s32.totalorder %s95, %s98
      %p104 = scmp.eq.s32.totalorder %s17, 0
      %p105 = por %p103, %p104
      %p106 = scmp.ne.s32.totalorder %s95, %s98
      %p107 = scmp.eq.s32.totalorder %s22, 1
      %p108 = por %p106, %p107
      %p109 = scmp.ne.s32.totalorder %s98, %s99
      %p110 = scmp.eq.s32.totalorder %s22, 0
      %p111 = por %p109, %p110
      %p112 = scmp.ne.s32.totalorder %s98, %s99
      %p113 = scmp.eq.s32.totalorder %s23, 1
      %p114 = por %p112, %p113
      %p116 = scmp.ne.s32.totalorder %s99, %s115
      %p117 = scmp.eq.s32.totalorder %s23, 0
      %p118 = por %p116, %p117
      %p119 = scmp.le.s32.totalorder 1, %s17
      %p120 = scmp.lt.s32.totalorder %s17, 3
      %p121 = pnand %p119, %p120
      %p122 = pneg %p121
      // Predicated region
      $region9: #{tpu_custom_call.1} parent=5 // pred_check
        _
      $region10: #{tpu_custom_call.1} parent=5 // pred_check_branch
        %124 = sbr.rel (%p121) target = $region12
      $region11: #{tpu_custom_call.1} parent=5 // pred_region
        %s125 = ssub.s32 %s17, 1
        // Predicated region
        $region13: #{tpu_custom_call.1} parent=11 // pred_check
          %p126 = pneg %p64
        $region14: #{tpu_custom_call.1} parent=11 // pred_check_branch
          %128 = sbr.rel (%p126) target = $region16
        $region15: #{tpu_custom_call.1} parent=11 // pred_region
          %s130 = ssub.s32 16, 16
          %131 = vsyncadd [#allocation5], %s130
          %s133 = sshll.u32 %s1, 4
          %s134 = int_to_ptr.vmem [resolvable:$true] %s133
          %136 = dma.vmem_to_smem %s134, 16, [#allocation6], [#allocation5]
        $region16: #{tpu_custom_call.1} parent=11 // pred_fallthru
          _
        // Predicated region
        $region17: #{tpu_custom_call.1} parent=11 // pred_check
          %p137 = pneg %p85
        $region18: #{tpu_custom_call.1} parent=11 // pred_check_branch
          %139 = sbr.rel (%p137) target = $region20
        $region19: #{tpu_custom_call.1} parent=11 // pred_region
          %s141 = ssub.s32 16, 16
          %142 = vsyncadd [#allocation8], %s141
          %s144 = sshll.u32 %s2, 4
          %s145 = int_to_ptr.vmem [resolvable:$true] %s144
          %147 = dma.vmem_to_smem %s145, 16, [#allocation7], [#allocation8]
        $region20: #{tpu_custom_call.1} parent=11 // pred_fallthru
          _
      $region12: #{tpu_custom_call.1} parent=5 // pred_fallthru
        _
      %p148 = scmp.lt.s32.totalorder %s17, 2
      // Predicated region
      $region21: #{tpu_custom_call.1} parent=5 // pred_check
        %p149 = pneg %p148
      $region22: #{tpu_custom_call.1} parent=5 // pred_check_branch
        %151 = sbr.rel (%p149) target = $region24
      $region23: #{tpu_custom_call.1} parent=5 // pred_region
        // Predicated region
        $region25: #{tpu_custom_call.1} parent=23 // pred_check
          %p152 = pneg %p37
        $region26: #{tpu_custom_call.1} parent=23 // pred_check_branch
          %154 = sbr.rel (%p152) target = $region28
        $region27: #{tpu_custom_call.1} parent=23 // pred_region
          %s155 = sand.u32 %s27, 1
          %s156 = scalar_lea.sflag [#allocation3], %s155
          %s157 = sand.u32 %s27, 1
          %s158 = smul.addr %s157, 64
          %s159 = scalar_lea.vmem [#allocation2], %s158
          %s161 = ssub.s32 1024, 1024
          %162 = vsyncadd %s156, %s161
          %s163 = smul.addr %s17, 8
          %s164 = smul.addr %s163, 128
          %s165 = scalar_lea.hbm %s0, %s164
          %s166 = sshll.u32 %s159, 4
          %s167 = int_to_ptr.vmem [resolvable:$true] %s166
          %172 = dma.hbm_to_vmem [thread:$0]  %s165, 1024, %s167, %s156, 128, 128, 8
        $region28: #{tpu_custom_call.1} parent=23 // pred_fallthru
          _
      $region24: #{tpu_custom_call.1} parent=5 // pred_fallthru
        _
      %p173 = scmp.le.s32.totalorder 1, %s17
      %p174 = scmp.lt.s32.totalorder %s17, 3
      %p175 = pnand %p173, %p174
      %p176 = pneg %p175
      // Predicated region
      $region29: #{tpu_custom_call.1} parent=5 // pred_check
        _
      $region30: #{tpu_custom_call.1} parent=5 // pred_check_branch
        %178 = sbr.rel (%p175) target = $region32
      $region31: #{tpu_custom_call.1} parent=5 // pred_region
        %s179 = ssub.s32 %s17, 1
        %s180 = sand.u32 %s30, 1
        %s181 = scalar_lea.sflag [#allocation3], %s180
        %s182 = sand.u32 %s30, 1
        %s183 = smul.addr %s182, 64
        %s184 = scalar_lea.vmem [#allocation2], %s183
        // Predicated region
        $region33: #{tpu_custom_call.1} parent=31 // pred_check
          %p185 = pneg %p43
        $region34: #{tpu_custom_call.1} parent=31 // pred_check_branch
          %187 = sbr.rel (%p185) target = $region36
        $region35: #{tpu_custom_call.1} parent=31 // pred_region
          %188 = dma.done %s181, 1024
        $region36: #{tpu_custom_call.1} parent=31 // pred_fallthru
          _
        // Predicated region
        $region37: #{tpu_custom_call.1} parent=31 // pred_check
          %p189 = pneg %p64
        $region38: #{tpu_custom_call.1} parent=31 // pred_check_branch
          %191 = sbr.rel (%p189) target = $region40
        $region39: #{tpu_custom_call.1} parent=31 // pred_region
          %192 = dma.done [#allocation5], 16
        $region40: #{tpu_custom_call.1} parent=31 // pred_fallthru
          _
        // Predicated region
        $region41: #{tpu_custom_call.1} parent=31 // pred_check
          %p193 = pneg %p85
        $region42: #{tpu_custom_call.1} parent=31 // pred_check_branch
          %195 = sbr.rel (%p193) target = $region44
        $region43: #{tpu_custom_call.1} parent=31 // pred_region
          %196 = dma.done [#allocation8], 16
        $region44: #{tpu_custom_call.1} parent=31 // pred_fallthru
          _
        %197 = sfence
        %s198 = sand.u32 %s30, 1
        %s199 = scalar_lea.sflag [#allocation3], %s198
        %s200 = sand.u32 %s30, 1
        %s201 = smul.addr %s200, 64
        %s202 = scalar_lea.vmem [#allocation2], %s201
        %p203 = pneg %p43
        %p204 = pneg %p40
        %p205 = pneg %p64
        %p206 = pneg %p61
        %p207 = pneg %p85
        %p208 = pneg %p82
        %p209 = pneg %p111
        %p210 = pneg %p108
        %s211 = sand.u32 %s98, 1
        %s212 = scalar_lea.sflag [#allocation4], %s211
        %s213 = sand.u32 %s98, 1
        %s214 = smul.addr %s213, 128
        %s215 = scalar_lea.vmem [#allocation9], %s214
        %s216 = sld [smem:[#allocation7]]
        %v217 = vstv %s216
        %vm218 = vcmask 261120
        %219 = vst.msk [vmem:[%s215] sm:$0xff] %vm218, %v217
        %220 = vst.msk [vmem:[%s215 + $0x8] sm:$0xff] %vm218, %v217
        %221 = vst.msk [vmem:[%s215 + $0x10] sm:$0xff] %vm218, %v217
        %222 = vst.msk [vmem:[%s215 + $0x18] sm:$0xff] %vm218, %v217
        %s223 = sld [smem:[#allocation6]]
        %v224 = vld [vmem:[%s184] sm:$0xff]
        %v225 = vld [vmem:[%s184 + $0x8] sm:$0xff]
        %v226 = vstv %s223
        %v227 = vmul.f32 %v226, %v224
        %v228 = vmul.f32 %v226, %v225
        %v229 = vadd.f32 %v217, %v227
        %v230 = vadd.f32 %v217, %v228
        %s231 = sld [smem:[#allocation6 + $0x1]]
        %s232 = scalar_lea.vmem %s184, 16 [#allocation2]
        %v233 = vld [vmem:[%s232] sm:$0xff]
        %v234 = vld [vmem:[%s232 + $0x8] sm:$0xff]
        %v235 = vstv %s231
        %v236 = vmul.f32 %v235, %v233
        %v237 = vmul.f32 %v235, %v234
        %v238 = vadd.f32 %v229, %v236
        %v239 = vadd.f32 %v230, %v237
        %s240 = sld [smem:[#allocation6 + $0x2]]
        %s241 = scalar_lea.vmem %s184, 32 [#allocation2]
        %v242 = vld [vmem:[%s241] sm:$0xff]
        %v243 = vld [vmem:[%s241 + $0x8] sm:$0xff]
        %v244 = vstv %s240
        %v245 = vmul.f32 %v244, %v242
        %v246 = vmul.f32 %v244, %v243
        %v247 = vadd.f32 %v238, %v245
        %v248 = vadd.f32 %v239, %v246
        %s249 = sld [smem:[#allocation6 + $0x3]]
        %s250 = scalar_lea.vmem %s184, 48 [#allocation2]
        %v251 = vld [vmem:[%s250] sm:$0xff]
        %v252 = vld [vmem:[%s250 + $0x8] sm:$0xff]
        %v253 = vstv %s249
        %v254 = vmul.f32 %v253, %v251
        %v255 = vmul.f32 %v253, %v252
        %v256 = vadd.f32 %v247, %v254
        %v257 = vadd.f32 %v248, %v255
        %260 = vrot.lane.b32.xlu0 %v256, 8
        %v261 = vpop.permute.xlu0 %260
        %262 = vrot.lane.b32.xlu0 %v257, 8
        %v263 = vpop.permute.xlu0 %262
        %vm266 = vcmask 195648
        %267 = vst.msk [vmem:[%s215 + $0x8] sm:$0xff] %vm266, %v261
        %268 = vst.msk [vmem:[%s215 + $0x10] sm:$0xff] %vm266, %v263
        %s269 = sld [smem:[#allocation7 + $0x1]]
        %v270 = vstv %s269
        %s271 = scalar_lea.vmem %s215, 32 [#allocation9]
        %272 = vst.msk [vmem:[%s271] sm:$0xff] %vm218, %v270
        %273 = vst.msk [vmem:[%s271 + $0x8] sm:$0xff] %vm218, %v270
        %274 = vst.msk [vmem:[%s271 + $0x10] sm:$0xff] %vm218, %v270
        %275 = vst.msk [vmem:[%s271 + $0x18] sm:$0xff] %vm218, %v270
        %s276 = sld [smem:[#allocation6 + $0x4]]
        %v277 = vld [vmem:[%s184] sm:$0xff]
        %v278 = vld [vmem:[%s184 + $0x8] sm:$0xff]
        %v279 = vstv %s276
        %v280 = vmul.f32 %v279, %v277
        %v281 = vmul.f32 %v279, %v278
        %v282 = vadd.f32 %v270, %v280
        %v283 = vadd.f32 %v270, %v281
        %s284 = sld [smem:[#allocation6 + $0x5]]
        %v285 = vld [vmem:[%s232] sm:$0xff]
        %v286 = vld [vmem:[%s232 + $0x8] sm:$0xff]
        %v287 = vstv %s284
        %v288 = vmul.f32 %v287, %v285
        %v289 = vmul.f32 %v287, %v286
        %v290 = vadd.f32 %v282, %v288
        %v291 = vadd.f32 %v283, %v289
        %s292 = sld [smem:[#allocation6 + $0x6]]
        %v293 = vld [vmem:[%s241] sm:$0xff]
        %v294 = vld [vmem:[%s241 + $0x8] sm:$0xff]
        %v295 = vstv %s292
        %v296 = vmul.f32 %v295, %v293
        %v297 = vmul.f32 %v295, %v294
        %v298 = vadd.f32 %v290, %v296
        %v299 = vadd.f32 %v291, %v297
        %s300 = sld [smem:[#allocation6 + $0x7]]
        %v301 = vld [vmem:[%s250] sm:$0xff]
        %v302 = vld [vmem:[%s250 + $0x8] sm:$0xff]
        %v303 = vstv %s300
        %v304 = vmul.f32 %v303, %v301
        %v305 = vmul.f32 %v303, %v302
        %v306 = vadd.f32 %v298, %v304
        %v307 = vadd.f32 %v299, %v305
        %310 = vrot.lane.b32.xlu0 %v306, 8
        %v311 = vpop.permute.xlu0 %310
        %312 = vrot.lane.b32.xlu0 %v307, 8
        %v313 = vpop.permute.xlu0 %312
        %316 = vst.msk [vmem:[%s271 + $0x8] sm:$0xff] %vm266, %v311
        %317 = vst.msk [vmem:[%s271 + $0x10] sm:$0xff] %vm266, %v313
        %s318 = sld [smem:[#allocation7 + $0x2]]
        %v319 = vstv %s318
        %s320 = scalar_lea.vmem %s215, 64 [#allocation9]
        %321 = vst.msk [vmem:[%s320] sm:$0xff] %vm218, %v319
        %322 = vst.msk [vmem:[%s320 + $0x8] sm:$0xff] %vm218, %v319
        %323 = vst.msk [vmem:[%s320 + $0x10] sm:$0xff] %vm218, %v319
        %324 = vst.msk [vmem:[%s320 + $0x18] sm:$0xff] %vm218, %v319
        %s325 = sld [smem:[#allocation6 + $0x8]]
        %v326 = vld [vmem:[%s184] sm:$0xff]
        %v327 = vld [vmem:[%s184 + $0x8] sm:$0xff]
        %v328 = vstv %s325
        %v329 = vmul.f32 %v328, %v326
        %v330 = vmul.f32 %v328, %v327
        %v331 = vadd.f32 %v319, %v329
        %v332 = vadd.f32 %v319, %v330
        %s333 = sld [smem:[#allocation6 + $0x9]]
        %v334 = vld [vmem:[%s232] sm:$0xff]
        %v335 = vld [vmem:[%s232 + $0x8] sm:$0xff]
        %v336 = vstv %s333
        %v337 = vmul.f32 %v336, %v334
        %v338 = vmul.f32 %v336, %v335
        %v339 = vadd.f32 %v331, %v337
        %v340 = vadd.f32 %v332, %v338
        %s341 = sld [smem:[#allocation6 + $0xa]]
        %v342 = vld [vmem:[%s241] sm:$0xff]
        %v343 = vld [vmem:[%s241 + $0x8] sm:$0xff]
        %v344 = vstv %s341
        %v345 = vmul.f32 %v344, %v342
        %v346 = vmul.f32 %v344, %v343
        %v347 = vadd.f32 %v339, %v345
        %v348 = vadd.f32 %v340, %v346
        %s349 = sld [smem:[#allocation6 + $0xb]]
        %v350 = vld [vmem:[%s250] sm:$0xff]
        %v351 = vld [vmem:[%s250 + $0x8] sm:$0xff]
        %v352 = vstv %s349
        %v353 = vmul.f32 %v352, %v350
        %v354 = vmul.f32 %v352, %v351
        %v355 = vadd.f32 %v347, %v353
        %v356 = vadd.f32 %v348, %v354
        %359 = vrot.lane.b32.xlu0 %v355, 8
        %v360 = vpop.permute.xlu0 %359
        %361 = vrot.lane.b32.xlu0 %v356, 8
        %v362 = vpop.permute.xlu0 %361
        %365 = vst.msk [vmem:[%s320 + $0x8] sm:$0xff] %vm266, %v360
        %366 = vst.msk [vmem:[%s320 + $0x10] sm:$0xff] %vm266, %v362
        %s367 = sld [smem:[#allocation7 + $0x3]]
        %v368 = vstv %s367
        %s369 = scalar_lea.vmem %s215, 96 [#allocation9]
        %370 = vst.msk [vmem:[%s369] sm:$0xff] %vm218, %v368
        %371 = vst.msk [vmem:[%s369 + $0x8] sm:$0xff] %vm218, %v368
        %372 = vst.msk [vmem:[%s369 + $0x10] sm:$0xff] %vm218, %v368
        %373 = vst.msk [vmem:[%s369 + $0x18] sm:$0xff] %vm218, %v368
        %s374 = sld [smem:[#allocation6 + $0xc]]
        %v375 = vld [vmem:[%s184] sm:$0xff]
        %v376 = vld [vmem:[%s184 + $0x8] sm:$0xff]
        %v377 = vstv %s374
        %v378 = vmul.f32 %v377, %v375
        %v379 = vmul.f32 %v377, %v376
        %v380 = vadd.f32 %v368, %v378
        %v381 = vadd.f32 %v368, %v379
        %s382 = sld [smem:[#allocation6 + $0xd]]
        %v383 = vld [vmem:[%s232] sm:$0xff]
        %v384 = vld [vmem:[%s232 + $0x8] sm:$0xff]
        %v385 = vstv %s382
        %v386 = vmul.f32 %v385, %v383
        %v387 = vmul.f32 %v385, %v384
        %v388 = vadd.f32 %v380, %v386
        %v389 = vadd.f32 %v381, %v387
        %s390 = sld [smem:[#allocation6 + $0xe]]
        %v391 = vld [vmem:[%s241] sm:$0xff]
        %v392 = vld [vmem:[%s241 + $0x8] sm:$0xff]
        %v393 = vstv %s390
        %v394 = vmul.f32 %v393, %v391
        %v395 = vmul.f32 %v393, %v392
        %v396 = vadd.f32 %v388, %v394
        %v397 = vadd.f32 %v389, %v395
        %s398 = sld [smem:[#allocation6 + $0xf]]
        %v399 = vld [vmem:[%s250] sm:$0xff]
        %v400 = vld [vmem:[%s250 + $0x8] sm:$0xff]
        %v401 = vstv %s398
        %v402 = vmul.f32 %v401, %v399
        %v403 = vmul.f32 %v401, %v400
        %v404 = vadd.f32 %v396, %v402
        %v405 = vadd.f32 %v397, %v403
        %408 = vrot.lane.b32.xlu0 %v404, 8
        %v409 = vpop.permute.xlu0 %408
        %410 = vrot.lane.b32.xlu0 %v405, 8
        %v411 = vpop.permute.xlu0 %410
        %414 = vst.msk [vmem:[%s369 + $0x8] sm:$0xff] %vm266, %v409
        %415 = vst.msk [vmem:[%s369 + $0x10] sm:$0xff] %vm266, %v411
        %s416 = sand.u32 %s98, 1
        %s417 = scalar_lea.sflag [#allocation4], %s416
        %s418 = sand.u32 %s98, 1
        %s419 = smul.addr %s418, 128
        %s420 = scalar_lea.vmem [#allocation9], %s419
        // Predicated region
        $region45: #{tpu_custom_call.1} parent=31 // pred_check
          %p421 = pneg %p108
        $region46: #{tpu_custom_call.1} parent=31 // pred_check_branch
          %423 = sbr.rel (%p421) target = $region48
        $region47: #{tpu_custom_call.1} parent=31 // pred_region
          %s425 = ssub.s32 2048, 2048
          %426 = vsyncadd %s417, %s425
          %s427 = smul.addr %s22, 16
          %s428 = smul.addr %s427, 128
          %s429 = scalar_lea.hbm %s3, %s428
          %s430 = sshll.u32 %s420, 4
          %s431 = int_to_ptr.vmem [resolvable:$true] %s430
          %436 = dma.vmem_to_hbm [thread:$0]  %s431, 2048, %s429, %s417, 128, 128, 8
        $region48: #{tpu_custom_call.1} parent=31 // pred_fallthru
          _
      $region32: #{tpu_custom_call.1} parent=5 // pred_fallthru
        _
      %p437 = scmp.le.s32.totalorder 2, %s17
      // Predicated region
      $region49: #{tpu_custom_call.1} parent=5 // pred_check
        %p438 = pneg %p437
      $region50: #{tpu_custom_call.1} parent=5 // pred_check_branch
        %440 = sbr.rel (%p438) target = $region52
      $region51: #{tpu_custom_call.1} parent=5 // pred_region
        %s441 = ssub.s32 %s17, 2
        // Predicated region
        $region53: #{tpu_custom_call.1} parent=51 // pred_check
          %p442 = pneg %p114
        $region54: #{tpu_custom_call.1} parent=51 // pred_check_branch
          %444 = sbr.rel (%p442) target = $region56
        $region55: #{tpu_custom_call.1} parent=51 // pred_region
          %s445 = sand.u32 %s99, 1
          %s446 = scalar_lea.sflag [#allocation4], %s445
          %s447 = sand.u32 %s99, 1
          %s448 = smul.addr %s447, 128
          %s449 = scalar_lea.vmem [#allocation9], %s448
          %450 = dma.done %s446, 2048
        $region56: #{tpu_custom_call.1} parent=51 // pred_fallthru
          _
      $region52: #{tpu_custom_call.1} parent=5 // pred_fallthru
        _
    $region6: #{tpu_custom_call.1} parent=1 // loop_footer
      %s21 = sadd.s32 1, %s17
    $region7: #{tpu_custom_call.1} parent=1 // loop_footer_branch
      %16 = sbr.rel target = $region3
    $region8: #{tpu_custom_call.1} parent=1 // loop_exit
      _
    %451 = vsyncpa [#allocation3], 1
    %s452 = scalar_lea.sflag [#allocation3], 1
    %453 = vsyncpa %s452, 1
    %454 = vsyncpa [#allocation4], 1
    %s455 = scalar_lea.sflag [#allocation4], 1
    %456 = vsyncpa %s455, 1
    %457 = vsyncpa [#allocation5], 1
    %s458 = scalar_lea.sflag [#allocation5], 1
    %459 = vsyncpa %s458, 1
    %460 = vsyncpa [#allocation8], 1

</llo_original>
